<compile_context>
chip_gen: v5e
topology: v5e:2x2
jax: 0.10.0
libtpu: 0.0.40
codegen_flags: <defaults>
</compile_context>

<pallas_src>
import functools

import jax
import jax.numpy as jnp
from jax import lax
from jax.experimental import pallas as pl
from jax.experimental.pallas import tpu as pltpu

_EPS = 1e-5


def _inv_res_kernel(taps_ref, w9_ref, b1_ref, w2_ref, b2_ref, o_ref, *,
                    expansion, in_channels, fuse_shortcut):
    E, C = expansion, in_channels

    # Load the 9 taps once ((C, TM) bf16 each), promote to f32 once; re-used
    # across all E expansion slices.
    taps = [taps_ref[t].astype(jnp.float32) for t in range(9)]

    # Grouped 3x3 conv (depthwise with channel multiplier E): per expansion
    # slice e, 9 VPU FMAs against the SAME (C, TM) taps.  w9_ref is e-major
    # flattened as index t*E + e -> (C, 1) folded (conv * BN1-scale) weights.
    # Folded bias + BN1 and ReLU6 stay in f32 (v5e-safe).
    h_blocks = []
    for e in range(E):
        acc = taps[0] * w9_ref[0 * E + e]
        for t in range(1, 9):
            acc = acc + taps[t] * w9_ref[t * E + e]
        h_blocks.append(jnp.clip(acc + b1_ref[e], 0.0, 6.0))

    if fuse_shortcut:
        # stride==1: centre tap == un-shifted input -> shortcut operand for free.
        h_blocks.append(taps[4])

    # e-major concatenation matches the column permutation applied to w2 in the
    # wrapper; single cast to bf16 feeds one fused MXU matmul (+ shortcut).
    hcat = jnp.concatenate(h_blocks, axis=0).astype(jnp.bfloat16)   # (K, TM)
    y = jnp.dot(w2_ref[...], hcat,
                preferred_element_type=jnp.float32) + b2_ref[...]
    o_ref[...] = y.astype(o_ref.dtype)


def _fold_bn(conv_bias, gamma, beta, mean, var, eps=_EPS):
    scale = gamma / jnp.sqrt(var + eps)
    bias = (conv_bias - mean) * scale + beta
    return scale.astype(jnp.float32), bias.astype(jnp.float32)


def _plan_tiles(M, per_lane_bytes, budget_bytes):
    """Pick (TM, M_pad): lane-dense, VMEM-budget aware, pipeline friendly."""
    unit = 512 if M >= 512 else 128
    m_pad = -(-M // unit) * unit
    cap = max(128, (budget_bytes // max(per_lane_bytes, 1)) // 128 * 128)
    # Prefer >= 4 grid steps with TM >= 512 (v7x: 2 TCs x double buffering).
    for tm in (2048, 1024, 512):
        if tm <= cap and m_pad % tm == 0 and m_pad // tm >= 4:
            return tm, m_pad
    # Otherwise the largest lane-dense tile that fits the budget (do not shrink
    # below 512 just to get multiple steps on single-TC chips).
    for tm in (2048, 1024, 512, 256, 128):
        if tm <= cap and m_pad % tm == 0:
            return tm, m_pad
    return m_pad, m_pad


def inverted_residual_pallas(x_nchw, p, in_channels, out_channels,
                             expansion_factor, stride):
    N, C, H, W = x_nchw.shape
    assert C == in_channels
    E = expansion_factor
    mid = C * E
    H_out = (H + 2 - 3) // stride + 1
    W_out = (W + 2 - 3) // stride + 1
    M = N * H_out * W_out

    # ---------------- XLA-side layout plumbing (bf16 end-to-end) ------------
    x_nhwc = jnp.transpose(x_nchw, (0, 2, 3, 1)).astype(jnp.bfloat16)
    x_pad = jnp.pad(x_nhwc, ((0, 0), (1, 1), (1, 1), (0, 0)))
    taps = []
    for ky in range(3):
        for kx in range(3):
            taps.append(x_pad[:, ky:ky + (H_out - 1) * stride + 1:stride,
                              kx:kx + (W_out - 1) * stride + 1:stride, :])
    taps = jnp.stack(taps, 0)                                # (9, N, Ho, Wo, C)
    taps = jnp.transpose(taps, (0, 4, 1, 2, 3)).reshape(9, C, M)   # bf16

    # Fold eval-mode BN into conv weights / biases.
    s1, b1 = _fold_bn(p['b_dw'], p['bn1_gamma'], p['bn1_beta'],
                      p['bn1_mean'], p['bn1_var'])
    s2, b2 = _fold_bn(p['b_pw'], p['bn2_gamma'], p['bn2_beta'],
                      p['bn2_mean'], p['bn2_var'])

    # e-major permutation of the mid channels: new index e*C + c <-> old c*E + e
    # (grouped conv: output channel o uses input channel o // E).
    perm = (jnp.arange(C)[None, :] * E + jnp.arange(E)[:, None]).reshape(-1)

    w9 = jnp.transpose(p['w_dw'][:, 0], (1, 2, 0)).reshape(9, mid)   # [t, o]
    w9 = (w9 * s1[None, :])[:, perm]                                 # e-major cols
    w9 = w9.reshape(9 * E, C, 1).astype(jnp.float32)                 # index t*E+e
    b1v = b1[perm].reshape(E, C, 1).astype(jnp.float32)
    w2 = (p['w_pw'][:, :, 0, 0] * s2[:, None])[:, perm]              # (C_out, mid)

    if stride == 1:
        # Fuse shortcut: concat its (folded) weights onto the pointwise weights
        # and its bias onto the pointwise bias; its operand is the centre tap.
        ss, bs = _fold_bn(p['b_sc'], p['bn3_gamma'], p['bn3_beta'],
                          p['bn3_mean'], p['bn3_var'])
        ws = p['w_sc'][:, :, 0, 0] * ss[:, None]                     # (C_out, C)
        w2 = jnp.concatenate([w2, ws], axis=1)
        b2 = b2 + bs
    K = w2.shape[1]
    w2 = w2.astype(jnp.bfloat16)
    b2c = b2.reshape(-1, 1).astype(jnp.float32)

    # ---------------- VMEM-budget-aware tile plan ---------------------------
    out_bytes = 4
    per_lane = (2 * 9 * C * 2                 # taps block, double-buffered bf16
                + 2 * out_channels * out_bytes  # output block, double-buffered
                + 9 * C * 4                   # f32 tap values (live in loop)
                + mid * 4                     # h blocks (f32)
                + K * (4 + 2)                 # hcat f32 + bf16
                + out_channels * 4)           # y accumulator
    fixed = 2 * (w9.size * 4 + b1v.size * 4 + w2.size * 2 + b2c.size * 4)
    budget = 12 * 2**20 - fixed
    TM, M_pad = _plan_tiles(M, per_lane, budget)
    if M_pad != M:
        taps = jnp.pad(taps, ((0, 0), (0, 0), (0, M_pad - M)))

    in_specs = [
        pl.BlockSpec((9, C, TM), lambda i: (0, 0, i)),
        pl.BlockSpec((9 * E, C, 1), lambda i: (0, 0, 0)),
        pl.BlockSpec((E, C, 1), lambda i: (0, 0, 0)),
        pl.BlockSpec((out_channels, K), lambda i: (0, 0)),
        pl.BlockSpec((out_channels, 1), lambda i: (0, 0)),
    ]

    flops = 2 * M_pad * (9 * mid + K * out_channels)
    bytes_accessed = (taps.size * 2 + w9.size * 4 + b1v.size * 4
                      + w2.size * 2 + b2c.size * 4
                      + out_channels * M_pad * out_bytes)

    kernel = functools.partial(_inv_res_kernel, expansion=E, in_channels=C,
                               fuse_shortcut=(stride == 1))

    out_cm = pl.pallas_call(
        kernel,
        out_shape=jax.ShapeDtypeStruct((out_channels, M_pad), jnp.float32),
        grid=(M_pad // TM,),
        in_specs=in_specs,
        out_specs=pl.BlockSpec((out_channels, TM), lambda i: (0, i)),
        compiler_params=pltpu.CompilerParams(
            dimension_semantics=("parallel",),
            vmem_limit_bytes=32 * 2**20),
        cost_estimate=pl.CostEstimate(flops=int(flops), transcendentals=0,
                                      bytes_accessed=int(bytes_accessed)),
    )(taps, w9, b1v, w2, b2c)

    out = out_cm[:, :M].reshape(out_channels, N, H_out, W_out)
    return jnp.transpose(out, (1, 0, 2, 3))                      # back to NCHW


def inverted_residual_ref(x, p, in_channels, out_channels, expansion_factor,
                          stride, eps=_EPS):
    """Pure-JAX reference matching PyTorch eval-mode forward (NCHW)."""
    def bn(y, g, b, m, v):
        return ((y - m[None, :, None, None]) / jnp.sqrt(v + eps)[None, :, None, None]
                * g[None, :, None, None] + b[None, :, None, None])

    dn = ('NCHW', 'OIHW', 'NCHW')
    y = lax.conv_general_dilated(x, p['w_dw'], (stride, stride), ((1, 1), (1, 1)),
                                 dimension_numbers=dn,
                                 feature_group_count=in_channels)
    y = y + p['b_dw'][None, :, None, None]
    y = bn(y, p['bn1_gamma'], p['bn1_beta'], p['bn1_mean'], p['bn1_var'])
    y = jnp.clip(y, 0.0, 6.0)
    y = lax.conv_general_dilated(y, p['w_pw'], (1, 1), ((0, 0), (0, 0)),
                                 dimension_numbers=dn)
    y = y + p['b_pw'][None, :, None, None]
    y = bn(y, p['bn2_gamma'], p['bn2_beta'], p['bn2_mean'], p['bn2_var'])
    if stride == 1:
        s = lax.conv_general_dilated(x, p['w_sc'], (1, 1), ((0, 0), (0, 0)),
                                     dimension_numbers=dn)
        s = s + p['b_sc'][None, :, None, None]
        s = bn(s, p['bn3_gamma'], p['bn3_beta'], p['bn3_mean'], p['bn3_var'])
        y = y + s
    return y


def init_params(key, in_channels, out_channels, expansion_factor):
    mid = in_channels * expansion_factor
    ks = jax.random.split(key, 18)
    f32 = jnp.float32
    p = {
        # Conv3x3 grouped (depthwise with multiplier E) + BN1
        'w_dw': 0.1 * jax.random.normal(ks[0], (mid, 1, 3, 3), f32),
        'b_dw': 0.05 * jax.random.normal(ks[1], (mid,), f32),
        'bn1_gamma': 1.0 + 0.1 * jax.random.normal(ks[2], (mid,), f32),
        'bn1_beta': 0.1 * jax.random.normal(ks[3], (mid,), f32),
        'bn1_mean': 0.05 * jax.random.normal(ks[4], (mid,), f32),
        'bn1_var': 0.5 + jax.random.uniform(ks[5], (mid,), f32),
        # Conv1x1 pointwise + BN2
        'w_pw': 0.1 * jax.random.normal(ks[6], (out_channels, mid, 1, 1), f32),
        'b_pw': 0.05 * jax.random.normal(ks[7], (out_channels,), f32),
        'bn2_gamma': 1.0 + 0.1 * jax.random.normal(ks[8], (out_channels,), f32),
        'bn2_beta': 0.1 * jax.random.normal(ks[9], (out_channels,), f32),
        'bn2_mean': 0.05 * jax.random.normal(ks[10], (out_channels,), f32),
        'bn2_var': 0.5 + jax.random.uniform(ks[11], (out_channels,), f32),
        # Shortcut Conv1x1 + BN3 (used only when stride == 1)
        'w_sc': 0.1 * jax.random.normal(ks[12], (out_channels, in_channels, 1, 1), f32),
        'b_sc': 0.05 * jax.random.normal(ks[13], (out_channels,), f32),
        'bn3_gamma': 1.0 + 0.1 * jax.random.normal(ks[14], (out_channels,), f32),
        'bn3_beta': 0.1 * jax.random.normal(ks[15], (out_channels,), f32),
        'bn3_mean': 0.05 * jax.random.normal(ks[16], (out_channels,), f32),
        'bn3_var': 0.5 + jax.random.uniform(ks[17], (out_channels,), f32),
    }
    return p


if __name__ == "__main__":
    in_channels, out_channels, expansion_factor = 4, 8, 2
    key = jax.random.PRNGKey(0)
    kx, kp = jax.random.split(key)
    x = jax.random.normal(kx, (2, in_channels, 16, 16), jnp.float32)   # NCHW
    params = init_params(kp, in_channels, out_channels, expansion_factor)

    for stride in (1, 2):
        out = inverted_residual_pallas(x, params, in_channels, out_channels,
                                       expansion_factor, stride)
        out = jax.block_until_ready(out)
        ref = inverted_residual_ref(x, params, in_channels, out_channels,
                                    expansion_factor, stride)
        assert out.shape == ref.shape
        # bf16 MXU/tap operands with f32 accumulation -> relaxed tolerance.
        max_err = float(jnp.max(jnp.abs(out - ref)))
        assert jnp.allclose(out, ref, atol=2e-2, rtol=2e-2), (
            f"mismatch vs JAX reference (stride={stride}, max_abs_err={max_err})")

    print("KERNEL_OK")
</pallas_src>

<mosaic_0001>
module attributes {stable_mosaic.version = 11 : i64} {
  func.func @_inv_res_kernel(%arg0: i32, %arg1: memref<9x4x512xbf16, #tpu.memory_space<vmem>>, %arg2: memref<18x4x1xf32, #tpu.memory_space<vmem>>, %arg3: memref<2x4x1xf32, #tpu.memory_space<vmem>>, %arg4: memref<8x12xbf16, #tpu.memory_space<vmem>>, %arg5: memref<8x1xf32, #tpu.memory_space<vmem>>, %arg6: memref<8x512xf32, #tpu.memory_space<vmem>>) attributes {dimension_semantics = [#tpu.dimension_semantics<parallel>], iteration_bounds = array<i64: 1>, scalar_prefetch = 0 : i64, scratch_operands = 0 : i64, tpu.core_type = #tpu.core_type<tc>, window_params = [{transform_indices = @transform_0, window_bounds = array<i64: 9, 4, 512>}, {pipeline_mode = #tpu.pipeline_mode<synchronous>, transform_indices = @transform_1, window_bounds = array<i64: 18, 4, 1>}, {pipeline_mode = #tpu.pipeline_mode<synchronous>, transform_indices = @transform_2, window_bounds = array<i64: 2, 4, 1>}, {pipeline_mode = #tpu.pipeline_mode<synchronous>, transform_indices = @transform_3, window_bounds = array<i64: 8, 12>}, {pipeline_mode = #tpu.pipeline_mode<synchronous>, transform_indices = @transform_4, window_bounds = array<i64: 8, 1>}, {transform_indices = @transform_5, window_bounds = array<i64: 8, 512>}]} {
    %c0 = arith.constant 0 : index
    %c0_0 = arith.constant 0 : index
    %c0_1 = arith.constant 0 : index
    %0 = vector.load %arg1[%c0, %c0_0, %c0_1] : memref<9x4x512xbf16, #tpu.memory_space<vmem>>, vector<1x4x512xbf16>
    %1 = vector.shape_cast %0 : vector<1x4x512xbf16> to vector<4x512xbf16>
    %2 = arith.extf %1 : vector<4x512xbf16> to vector<4x512xf32>
    %c1 = arith.constant 1 : index
    %c0_2 = arith.constant 0 : index
    %c0_3 = arith.constant 0 : index
    %3 = vector.load %arg1[%c1, %c0_2, %c0_3] : memref<9x4x512xbf16, #tpu.memory_space<vmem>>, vector<1x4x512xbf16>
    %4 = vector.shape_cast %3 : vector<1x4x512xbf16> to vector<4x512xbf16>
    %5 = arith.extf %4 : vector<4x512xbf16> to vector<4x512xf32>
    %c2 = arith.constant 2 : index
    %c0_4 = arith.constant 0 : index
    %c0_5 = arith.constant 0 : index
    %6 = vector.load %arg1[%c2, %c0_4, %c0_5] : memref<9x4x512xbf16, #tpu.memory_space<vmem>>, vector<1x4x512xbf16>
    %7 = vector.shape_cast %6 : vector<1x4x512xbf16> to vector<4x512xbf16>
    %8 = arith.extf %7 : vector<4x512xbf16> to vector<4x512xf32>
    %c3 = arith.constant 3 : index
    %c0_6 = arith.constant 0 : index
    %c0_7 = arith.constant 0 : index
    %9 = vector.load %arg1[%c3, %c0_6, %c0_7] : memref<9x4x512xbf16, #tpu.memory_space<vmem>>, vector<1x4x512xbf16>
    %10 = vector.shape_cast %9 : vector<1x4x512xbf16> to vector<4x512xbf16>
    %11 = arith.extf %10 : vector<4x512xbf16> to vector<4x512xf32>
    %c4 = arith.constant 4 : index
    %c0_8 = arith.constant 0 : index
    %c0_9 = arith.constant 0 : index
    %12 = vector.load %arg1[%c4, %c0_8, %c0_9] : memref<9x4x512xbf16, #tpu.memory_space<vmem>>, vector<1x4x512xbf16>
    %13 = vector.shape_cast %12 : vector<1x4x512xbf16> to vector<4x512xbf16>
    %14 = arith.extf %13 : vector<4x512xbf16> to vector<4x512xf32>
    %c5 = arith.constant 5 : index
    %c0_10 = arith.constant 0 : index
    %c0_11 = arith.constant 0 : index
    %15 = vector.load %arg1[%c5, %c0_10, %c0_11] : memref<9x4x512xbf16, #tpu.memory_space<vmem>>, vector<1x4x512xbf16>
    %16 = vector.shape_cast %15 : vector<1x4x512xbf16> to vector<4x512xbf16>
    %17 = arith.extf %16 : vector<4x512xbf16> to vector<4x512xf32>
    %c6 = arith.constant 6 : index
    %c0_12 = arith.constant 0 : index
    %c0_13 = arith.constant 0 : index
    %18 = vector.load %arg1[%c6, %c0_12, %c0_13] : memref<9x4x512xbf16, #tpu.memory_space<vmem>>, vector<1x4x512xbf16>
    %19 = vector.shape_cast %18 : vector<1x4x512xbf16> to vector<4x512xbf16>
    %20 = arith.extf %19 : vector<4x512xbf16> to vector<4x512xf32>
    %c7 = arith.constant 7 : index
    %c0_14 = arith.constant 0 : index
    %c0_15 = arith.constant 0 : index
    %21 = vector.load %arg1[%c7, %c0_14, %c0_15] : memref<9x4x512xbf16, #tpu.memory_space<vmem>>, vector<1x4x512xbf16>
    %22 = vector.shape_cast %21 : vector<1x4x512xbf16> to vector<4x512xbf16>
    %23 = arith.extf %22 : vector<4x512xbf16> to vector<4x512xf32>
    %c8 = arith.constant 8 : index
    %c0_16 = arith.constant 0 : index
    %c0_17 = arith.constant 0 : index
    %24 = vector.load %arg1[%c8, %c0_16, %c0_17] : memref<9x4x512xbf16, #tpu.memory_space<vmem>>, vector<1x4x512xbf16>
    %25 = vector.shape_cast %24 : vector<1x4x512xbf16> to vector<4x512xbf16>
    %26 = arith.extf %25 : vector<4x512xbf16> to vector<4x512xf32>
    %c0_18 = arith.constant 0 : index
    %c0_19 = arith.constant 0 : index
    %c0_20 = arith.constant 0 : index
    %27 = vector.load %arg2[%c0_18, %c0_19, %c0_20] : memref<18x4x1xf32, #tpu.memory_space<vmem>>, vector<1x4x1xf32>
    %28 = vector.shape_cast %27 : vector<1x4x1xf32> to vector<4x1xf32>
    %29 = vector.broadcast %28 : vector<4x1xf32> to vector<4x512xf32>
    %30 = arith.mulf %2, %29 : vector<4x512xf32>
    %c2_21 = arith.constant 2 : index
    %c0_22 = arith.constant 0 : index
    %c0_23 = arith.constant 0 : index
    %31 = vector.load %arg2[%c2_21, %c0_22, %c0_23] : memref<18x4x1xf32, #tpu.memory_space<vmem>>, vector<1x4x1xf32>
    %32 = vector.shape_cast %31 : vector<1x4x1xf32> to vector<4x1xf32>
    %33 = vector.broadcast %32 : vector<4x1xf32> to vector<4x512xf32>
    %34 = arith.mulf %5, %33 : vector<4x512xf32>
    %35 = arith.addf %30, %34 : vector<4x512xf32>
    %c4_24 = arith.constant 4 : index
    %c0_25 = arith.constant 0 : index
    %c0_26 = arith.constant 0 : index
    %36 = vector.load %arg2[%c4_24, %c0_25, %c0_26] : memref<18x4x1xf32, #tpu.memory_space<vmem>>, vector<1x4x1xf32>
    %37 = vector.shape_cast %36 : vector<1x4x1xf32> to vector<4x1xf32>
    %38 = vector.broadcast %37 : vector<4x1xf32> to vector<4x512xf32>
    %39 = arith.mulf %8, %38 : vector<4x512xf32>
    %40 = arith.addf %35, %39 : vector<4x512xf32>
    %c6_27 = arith.constant 6 : index
    %c0_28 = arith.constant 0 : index
    %c0_29 = arith.constant 0 : index
    %41 = vector.load %arg2[%c6_27, %c0_28, %c0_29] : memref<18x4x1xf32, #tpu.memory_space<vmem>>, vector<1x4x1xf32>
    %42 = vector.shape_cast %41 : vector<1x4x1xf32> to vector<4x1xf32>
    %43 = vector.broadcast %42 : vector<4x1xf32> to vector<4x512xf32>
    %44 = arith.mulf %11, %43 : vector<4x512xf32>
    %45 = arith.addf %40, %44 : vector<4x512xf32>
    %c8_30 = arith.constant 8 : index
    %c0_31 = arith.constant 0 : index
    %c0_32 = arith.constant 0 : index
    %46 = vector.load %arg2[%c8_30, %c0_31, %c0_32] : memref<18x4x1xf32, #tpu.memory_space<vmem>>, vector<1x4x1xf32>
    %47 = vector.shape_cast %46 : vector<1x4x1xf32> to vector<4x1xf32>
    %48 = vector.broadcast %47 : vector<4x1xf32> to vector<4x512xf32>
    %49 = arith.mulf %14, %48 : vector<4x512xf32>
    %50 = arith.addf %45, %49 : vector<4x512xf32>
    %c10 = arith.constant 10 : index
    %c0_33 = arith.constant 0 : index
    %c0_34 = arith.constant 0 : index
    %51 = vector.load %arg2[%c10, %c0_33, %c0_34] : memref<18x4x1xf32, #tpu.memory_space<vmem>>, vector<1x4x1xf32>
    %52 = vector.shape_cast %51 : vector<1x4x1xf32> to vector<4x1xf32>
    %53 = vector.broadcast %52 : vector<4x1xf32> to vector<4x512xf32>
    %54 = arith.mulf %17, %53 : vector<4x512xf32>
    %55 = arith.addf %50, %54 : vector<4x512xf32>
    %c12 = arith.constant 12 : index
    %c0_35 = arith.constant 0 : index
    %c0_36 = arith.constant 0 : index
    %56 = vector.load %arg2[%c12, %c0_35, %c0_36] : memref<18x4x1xf32, #tpu.memory_space<vmem>>, vector<1x4x1xf32>
    %57 = vector.shape_cast %56 : vector<1x4x1xf32> to vector<4x1xf32>
    %58 = vector.broadcast %57 : vector<4x1xf32> to vector<4x512xf32>
    %59 = arith.mulf %20, %58 : vector<4x512xf32>
    %60 = arith.addf %55, %59 : vector<4x512xf32>
    %c14 = arith.constant 14 : index
    %c0_37 = arith.constant 0 : index
    %c0_38 = arith.constant 0 : index
    %61 = vector.load %arg2[%c14, %c0_37, %c0_38] : memref<18x4x1xf32, #tpu.memory_space<vmem>>, vector<1x4x1xf32>
    %62 = vector.shape_cast %61 : vector<1x4x1xf32> to vector<4x1xf32>
    %63 = vector.broadcast %62 : vector<4x1xf32> to vector<4x512xf32>
    %64 = arith.mulf %23, %63 : vector<4x512xf32>
    %65 = arith.addf %60, %64 : vector<4x512xf32>
    %c16 = arith.constant 16 : index
    %c0_39 = arith.constant 0 : index
    %c0_40 = arith.constant 0 : index
    %66 = vector.load %arg2[%c16, %c0_39, %c0_40] : memref<18x4x1xf32, #tpu.memory_space<vmem>>, vector<1x4x1xf32>
    %67 = vector.shape_cast %66 : vector<1x4x1xf32> to vector<4x1xf32>
    %68 = vector.broadcast %67 : vector<4x1xf32> to vector<4x512xf32>
    %69 = arith.mulf %26, %68 : vector<4x512xf32>
    %70 = arith.addf %65, %69 : vector<4x512xf32>
    %c0_41 = arith.constant 0 : index
    %c0_42 = arith.constant 0 : index
    %c0_43 = arith.constant 0 : index
    %71 = vector.load %arg3[%c0_41, %c0_42, %c0_43] : memref<2x4x1xf32, #tpu.memory_space<vmem>>, vector<1x4x1xf32>
    %72 = vector.shape_cast %71 : vector<1x4x1xf32> to vector<4x1xf32>
    %73 = vector.broadcast %72 : vector<4x1xf32> to vector<4x512xf32>
    %74 = arith.addf %70, %73 : vector<4x512xf32>
    %cst = arith.constant 0.000000e+00 : f32
    %cst_44 = arith.constant 6.000000e+00 : f32
    %75 = vector.broadcast %cst : f32 to vector<4x512xf32>
    %76 = arith.maximumf %75, %74 : vector<4x512xf32>
    %77 = vector.broadcast %cst_44 : f32 to vector<4x512xf32>
    %78 = arith.minimumf %77, %76 : vector<4x512xf32>
    %c1_45 = arith.constant 1 : index
    %c0_46 = arith.constant 0 : index
    %c0_47 = arith.constant 0 : index
    %79 = vector.load %arg2[%c1_45, %c0_46, %c0_47] : memref<18x4x1xf32, #tpu.memory_space<vmem>>, vector<1x4x1xf32>
    %80 = vector.shape_cast %79 : vector<1x4x1xf32> to vector<4x1xf32>
    %81 = vector.broadcast %80 : vector<4x1xf32> to vector<4x512xf32>
    %82 = arith.mulf %2, %81 : vector<4x512xf32>
    %c3_48 = arith.constant 3 : index
    %c0_49 = arith.constant 0 : index
    %c0_50 = arith.constant 0 : index
    %83 = vector.load %arg2[%c3_48, %c0_49, %c0_50] : memref<18x4x1xf32, #tpu.memory_space<vmem>>, vector<1x4x1xf32>
    %84 = vector.shape_cast %83 : vector<1x4x1xf32> to vector<4x1xf32>
    %85 = vector.broadcast %84 : vector<4x1xf32> to vector<4x512xf32>
    %86 = arith.mulf %5, %85 : vector<4x512xf32>
    %87 = arith.addf %82, %86 : vector<4x512xf32>
    %c5_51 = arith.constant 5 : index
    %c0_52 = arith.constant 0 : index
    %c0_53 = arith.constant 0 : index
    %88 = vector.load %arg2[%c5_51, %c0_52, %c0_53] : memref<18x4x1xf32, #tpu.memory_space<vmem>>, vector<1x4x1xf32>
    %89 = vector.shape_cast %88 : vector<1x4x1xf32> to vector<4x1xf32>
    %90 = vector.broadcast %89 : vector<4x1xf32> to vector<4x512xf32>
    %91 = arith.mulf %8, %90 : vector<4x512xf32>
    %92 = arith.addf %87, %91 : vector<4x512xf32>
    %c7_54 = arith.constant 7 : index
    %c0_55 = arith.constant 0 : index
    %c0_56 = arith.constant 0 : index
    %93 = vector.load %arg2[%c7_54, %c0_55, %c0_56] : memref<18x4x1xf32, #tpu.memory_space<vmem>>, vector<1x4x1xf32>
    %94 = vector.shape_cast %93 : vector<1x4x1xf32> to vector<4x1xf32>
    %95 = vector.broadcast %94 : vector<4x1xf32> to vector<4x512xf32>
    %96 = arith.mulf %11, %95 : vector<4x512xf32>
    %97 = arith.addf %92, %96 : vector<4x512xf32>
    %c9 = arith.constant 9 : index
    %c0_57 = arith.constant 0 : index
    %c0_58 = arith.constant 0 : index
    %98 = vector.load %arg2[%c9, %c0_57, %c0_58] : memref<18x4x1xf32, #tpu.memory_space<vmem>>, vector<1x4x1xf32>
    %99 = vector.shape_cast %98 : vector<1x4x1xf32> to vector<4x1xf32>
    %100 = vector.broadcast %99 : vector<4x1xf32> to vector<4x512xf32>
    %101 = arith.mulf %14, %100 : vector<4x512xf32>
    %102 = arith.addf %97, %101 : vector<4x512xf32>
    %c11 = arith.constant 11 : index
    %c0_59 = arith.constant 0 : index
    %c0_60 = arith.constant 0 : index
    %103 = vector.load %arg2[%c11, %c0_59, %c0_60] : memref<18x4x1xf32, #tpu.memory_space<vmem>>, vector<1x4x1xf32>
    %104 = vector.shape_cast %103 : vector<1x4x1xf32> to vector<4x1xf32>
    %105 = vector.broadcast %104 : vector<4x1xf32> to vector<4x512xf32>
    %106 = arith.mulf %17, %105 : vector<4x512xf32>
    %107 = arith.addf %102, %106 : vector<4x512xf32>
    %c13 = arith.constant 13 : index
    %c0_61 = arith.constant 0 : index
    %c0_62 = arith.constant 0 : index
    %108 = vector.load %arg2[%c13, %c0_61, %c0_62] : memref<18x4x1xf32, #tpu.memory_space<vmem>>, vector<1x4x1xf32>
    %109 = vector.shape_cast %108 : vector<1x4x1xf32> to vector<4x1xf32>
    %110 = vector.broadcast %109 : vector<4x1xf32> to vector<4x512xf32>
    %111 = arith.mulf %20, %110 : vector<4x512xf32>
    %112 = arith.addf %107, %111 : vector<4x512xf32>
    %c15 = arith.constant 15 : index
    %c0_63 = arith.constant 0 : index
    %c0_64 = arith.constant 0 : index
    %113 = vector.load %arg2[%c15, %c0_63, %c0_64] : memref<18x4x1xf32, #tpu.memory_space<vmem>>, vector<1x4x1xf32>
    %114 = vector.shape_cast %113 : vector<1x4x1xf32> to vector<4x1xf32>
    %115 = vector.broadcast %114 : vector<4x1xf32> to vector<4x512xf32>
    %116 = arith.mulf %23, %115 : vector<4x512xf32>
    %117 = arith.addf %112, %116 : vector<4x512xf32>
    %c17 = arith.constant 17 : index
    %c0_65 = arith.constant 0 : index
    %c0_66 = arith.constant 0 : index
    %118 = vector.load %arg2[%c17, %c0_65, %c0_66] : memref<18x4x1xf32, #tpu.memory_space<vmem>>, vector<1x4x1xf32>
    %119 = vector.shape_cast %118 : vector<1x4x1xf32> to vector<4x1xf32>
    %120 = vector.broadcast %119 : vector<4x1xf32> to vector<4x512xf32>
    %121 = arith.mulf %26, %120 : vector<4x512xf32>
    %122 = arith.addf %117, %121 : vector<4x512xf32>
    %c1_67 = arith.constant 1 : index
    %c0_68 = arith.constant 0 : index
    %c0_69 = arith.constant 0 : index
    %123 = vector.load %arg3[%c1_67, %c0_68, %c0_69] : memref<2x4x1xf32, #tpu.memory_space<vmem>>, vector<1x4x1xf32>
    %124 = vector.shape_cast %123 : vector<1x4x1xf32> to vector<4x1xf32>
    %125 = vector.broadcast %124 : vector<4x1xf32> to vector<4x512xf32>
    %126 = arith.addf %122, %125 : vector<4x512xf32>
    %cst_70 = arith.constant 0.000000e+00 : f32
    %cst_71 = arith.constant 6.000000e+00 : f32
    %127 = vector.broadcast %cst_70 : f32 to vector<4x512xf32>
    %128 = arith.maximumf %127, %126 : vector<4x512xf32>
    %129 = vector.broadcast %cst_71 : f32 to vector<4x512xf32>
    %130 = arith.minimumf %129, %128 : vector<4x512xf32>
    %131 = tpu.concatenate %78, %130, %14 in 0 : vector<4x512xf32>, vector<4x512xf32>, vector<4x512xf32> -> vector<12x512xf32>
    %132 = arith.truncf %131 : vector<12x512xf32> to vector<12x512xbf16>
    %c0_72 = arith.constant 0 : index
    %c0_73 = arith.constant 0 : index
    %133 = vector.load %arg4[%c0_72, %c0_73] : memref<8x12xbf16, #tpu.memory_space<vmem>>, vector<8x12xbf16>
    %cst_74 = arith.constant dense<0.000000e+00> : vector<8x512xf32>
    %134 = tpu.matmul %133, %132, %cst_74 {dimension_numbers = #tpu.dot_dimension_numbers<[1], [0], [0], [1], [0, 0, 1, 1], [], []>} : vector<8x12xbf16>, vector<12x512xbf16>, vector<8x512xf32> -> vector<8x512xf32>
    %c0_75 = arith.constant 0 : index
    %c0_76 = arith.constant 0 : index
    %135 = vector.load %arg5[%c0_75, %c0_76] : memref<8x1xf32, #tpu.memory_space<vmem>>, vector<8x1xf32>
    %136 = vector.broadcast %135 : vector<8x1xf32> to vector<8x512xf32>
    %137 = arith.addf %134, %136 : vector<8x512xf32>
    %c0_77 = arith.constant 0 : index
    %c0_78 = arith.constant 0 : index
    %138 = vector.load %arg6[%c0_77, %c0_78] : memref<8x512xf32, #tpu.memory_space<vmem>>, vector<8x512xf32>
    tpu.vector_store %arg6[%c0_77, %c0_78], %137 {strides = array<i32>} : memref<8x512xf32, #tpu.memory_space<vmem>>, vector<8x512xf32>,
    return
  }
  func.func @transform_0(%arg0: i32) -> (i32, i32, i32) {
    %c0_i32 = arith.constant 0 : i32
    %c0_i32_0 = arith.constant 0 : i32
    %c0_i32_1 = arith.constant 0 : i32
    return %c0_i32, %c0_i32_0, %arg0 : i32, i32, i32
  }
  func.func @transform_1(%arg0: i32) -> (i32, i32, i32) {
    %c0_i32 = arith.constant 0 : i32
    %c0_i32_0 = arith.constant 0 : i32
    %c0_i32_1 = arith.constant 0 : i32
    %c0_i32_2 = arith.constant 0 : i32
    return %c0_i32, %c0_i32_0, %c0_i32_1 : i32, i32, i32
  }
  func.func @transform_2(%arg0: i32) -> (i32, i32, i32) {
    %c0_i32 = arith.constant 0 : i32
    %c0_i32_0 = arith.constant 0 : i32
    %c0_i32_1 = arith.constant 0 : i32
    %c0_i32_2 = arith.constant 0 : i32
    return %c0_i32, %c0_i32_0, %c0_i32_1 : i32, i32, i32
  }
  func.func @transform_3(%arg0: i32) -> (i32, i32) {
    %c0_i32 = arith.constant 0 : i32
    %c0_i32_0 = arith.constant 0 : i32
    %c0_i32_1 = arith.constant 0 : i32
    return %c0_i32, %c0_i32_0 : i32, i32
  }
  func.func @transform_4(%arg0: i32) -> (i32, i32) {
    %c0_i32 = arith.constant 0 : i32
    %c0_i32_0 = arith.constant 0 : i32
    %c0_i32_1 = arith.constant 0 : i32
    return %c0_i32, %c0_i32_0 : i32, i32
  }
  func.func @transform_5(%arg0: i32) -> (i32, i32) {
    %c0_i32 = arith.constant 0 : i32
    %c0_i32_0 = arith.constant 0 : i32
    return %c0_i32, %arg0 : i32, i32
  }
}

</mosaic_0001>

<llo_original>
// kernel: tpu_custom_call.1
$region0: #{tpu_custom_call.1}
  #allocation0 [shape = 'u32[]', space=smem, size = 0x4, offset = 0x4, fixed_abs, tag = 'smem constant byte address 0x4 - core index']
  #allocation1 [shape = 'u32[72,128]{1,0:T(1,128)}', space=vmem, size = 0x9000, scoped, tag = 'internal scratch']
  %s0 = inlined_call_operand.vmem [shape: bf16[9,4,512], index: 0, kind: input, shape index: {}]
  %s1 = inlined_call_operand.vmem [shape: f32[18,4,1], index: 1, kind: input, shape index: {}]
  %s2 = inlined_call_operand.vmem [shape: f32[2,4,1], index: 2, kind: input, shape index: {}]
  %s3 = inlined_call_operand.vmem [shape: bf16[8,12], index: 3, kind: input, shape index: {}]
  %s4 = inlined_call_operand.vmem [shape: f32[8,1], index: 4, kind: input, shape index: {}]
  %s5 = inlined_call_operand.hbm [shape: f32[8,512], index: 5, kind: output, shape index: {}]
  %s6 = sld [smem:[#allocation0]]
  $region30: #{tpu_custom_call.1} parent=0
    _
  %s8 = ssub.s32 1, %s6
  %s9 = scalar_select 0, %s8, %s6
  $region1: #{tpu_custom_call.1} parent=0
    #allocation2 [shape = 'u8[16384]{0}', space=vmem, size = 0x4000, scoped, tag = 'output window, operand 0, single buffered']
    #allocation3 [shape = 's32[1]{0}', space=sflag, size = 0x4, scoped, tag = 'scoped memory for tpu_custom_call.1']
    %10 = vsyncpa [#allocation3], 0
    // Predicated region
    $region2: #{tpu_custom_call.1} parent=1 // pred_check
      _
    $region3: #{tpu_custom_call.1} parent=1 // pred_check_branch
      %12 = sbr.rel (0) target = $region5
    $region4: #{tpu_custom_call.1} parent=1 // pred_region
      _
    $region5: #{tpu_custom_call.1} parent=1 // pred_fallthru
      _
    // Predicated region
    $region6: #{tpu_custom_call.1} parent=1 // pred_check
      _
    $region7: #{tpu_custom_call.1} parent=1 // pred_check_branch
      %14 = sbr.rel (0) target = $region9
    $region8: #{tpu_custom_call.1} parent=1 // pred_region
      _
    $region9: #{tpu_custom_call.1} parent=1 // pred_fallthru
      _
    // Predicated region
    $region10: #{tpu_custom_call.1} parent=1 // pred_check
      _
    $region11: #{tpu_custom_call.1} parent=1 // pred_check_branch
      %16 = sbr.rel (0) target = $region13
    $region12: #{tpu_custom_call.1} parent=1 // pred_region
      _
    $region13: #{tpu_custom_call.1} parent=1 // pred_fallthru
      _
    // Predicated region
    $region14: #{tpu_custom_call.1} parent=1 // pred_check
      _
    $region15: #{tpu_custom_call.1} parent=1 // pred_check_branch
      %18 = sbr.rel (0) target = $region17
    $region16: #{tpu_custom_call.1} parent=1 // pred_region
      _
    $region17: #{tpu_custom_call.1} parent=1 // pred_fallthru
      _
    // Predicated region
    $region18: #{tpu_custom_call.1} parent=1 // pred_check
      _
    $region19: #{tpu_custom_call.1} parent=1 // pred_check_branch
      %20 = sbr.rel (0) target = $region21
    $region20: #{tpu_custom_call.1} parent=1 // pred_region
      _
    $region21: #{tpu_custom_call.1} parent=1 // pred_fallthru
      _
    %v22 = vld [vmem:[%s0] sm:$0xff]
    %v23 = vunpack.c.l.bf16 %v22
    %v24 = vunpack.c.h.bf16 %v22
    %s25 = scalar_lea.vmem %s0, 8
    %v26 = vld [vmem:[%s25] sm:$0xff]
    %v27 = vunpack.c.l.bf16 %v26
    %v28 = vunpack.c.h.bf16 %v26
    %s29 = scalar_lea.vmem %s0, 16
    %v30 = vld [vmem:[%s29] sm:$0xff]
    %v31 = vunpack.c.l.bf16 %v30
    %v32 = vunpack.c.h.bf16 %v30
    %s33 = scalar_lea.vmem %s0, 24
    %v34 = vld [vmem:[%s33] sm:$0xff]
    %v35 = vunpack.c.l.bf16 %v34
    %v36 = vunpack.c.h.bf16 %v34
    %s37 = scalar_lea.vmem %s0, 32
    %v38 = vld [vmem:[%s37] sm:$0xff]
    %v39 = vunpack.c.l.bf16 %v38
    %v40 = vunpack.c.h.bf16 %v38
    %s41 = scalar_lea.vmem %s0, 40
    %v42 = vld [vmem:[%s41] sm:$0xff]
    %v43 = vunpack.c.l.bf16 %v42
    %v44 = vunpack.c.h.bf16 %v42
    %s45 = scalar_lea.vmem %s0, 48
    %v46 = vld [vmem:[%s45] sm:$0xff]
    %v47 = vunpack.c.l.bf16 %v46
    %v48 = vunpack.c.h.bf16 %v46
    %s49 = scalar_lea.vmem %s0, 56
    %v50 = vld [vmem:[%s49] sm:$0xff]
    %v51 = vunpack.c.l.bf16 %v50
    %v52 = vunpack.c.h.bf16 %v50
    %s53 = scalar_lea.vmem %s0, 64
    %v54 = vld [vmem:[%s53] sm:$0xff]
    %v55 = vunpack.c.l.bf16 %v54
    %v56 = vunpack.c.h.bf16 %v54
    %v57 = vld [vmem:[%s1] sm:$0xf]
    %59 = vset.pattern.permute.xlu0 0
    %60 = vperm.xlu0 %59, %v57
    %v61 = vpop.permute.xlu0 %60
    %v63 = vunpack.c.l.s4 839922192
    %v64 = vunpack.c.0.s8 %v63
    %v65 = vperm.slane %v61, %v64
    %v67 = vmul.f32 %v23, %v65
    %v68 = vmul.f32 %v24, %v65
    %s69 = scalar_lea.vmem %s1, 8
    %v70 = vld [vmem:[%s69] sm:$0xf]
    %72 = vset.pattern.permute.xlu0 0
    %73 = vperm.xlu0 %72, %v70
    %v74 = vpop.permute.xlu0 %73
    %v76 = vunpack.c.l.s4 839922192
    %v77 = vunpack.c.0.s8 %v76
    %v78 = vperm.slane %v74, %v77
    %v80 = vmul.f32 %v27, %v78
    %v81 = vmul.f32 %v28, %v78
    %v82 = vadd.f32 %v67, %v80
    %v83 = vadd.f32 %v68, %v81
    %s84 = scalar_lea.vmem %s1, 16
    %v85 = vld [vmem:[%s84] sm:$0xf]
    %87 = vset.pattern.permute.xlu0 0
    %88 = vperm.xlu0 %87, %v85
    %v89 = vpop.permute.xlu0 %88
    %v91 = vunpack.c.l.s4 839922192
    %v92 = vunpack.c.0.s8 %v91
    %v93 = vperm.slane %v89, %v92
    %v95 = vmul.f32 %v31, %v93
    %v96 = vmul.f32 %v32, %v93
    %v97 = vadd.f32 %v82, %v95
    %v98 = vadd.f32 %v83, %v96
    %s99 = scalar_lea.vmem %s1, 24
    %v100 = vld [vmem:[%s99] sm:$0xf]
    %102 = vset.pattern.permute.xlu0 0
    %103 = vperm.xlu0 %102, %v100
    %v104 = vpop.permute.xlu0 %103
    %v106 = vunpack.c.l.s4 839922192
    %v107 = vunpack.c.0.s8 %v106
    %v108 = vperm.slane %v104, %v107
    %v110 = vmul.f32 %v35, %v108
    %v111 = vmul.f32 %v36, %v108
    %v112 = vadd.f32 %v97, %v110
    %v113 = vadd.f32 %v98, %v111
    %s114 = scalar_lea.vmem %s1, 32
    %v115 = vld [vmem:[%s114] sm:$0xf]
    %117 = vset.pattern.permute.xlu0 0
    %118 = vperm.xlu0 %117, %v115
    %v119 = vpop.permute.xlu0 %118
    %v121 = vunpack.c.l.s4 839922192
    %v122 = vunpack.c.0.s8 %v121
    %v123 = vperm.slane %v119, %v122
    %v125 = vmul.f32 %v39, %v123
    %v126 = vmul.f32 %v40, %v123
    %v127 = vadd.f32 %v112, %v125
    %v128 = vadd.f32 %v113, %v126
    %s129 = scalar_lea.vmem %s1, 40
    %v130 = vld [vmem:[%s129] sm:$0xf]
    %132 = vset.pattern.permute.xlu0 0
    %133 = vperm.xlu0 %132, %v130
    %v134 = vpop.permute.xlu0 %133
    %v136 = vunpack.c.l.s4 839922192
    %v137 = vunpack.c.0.s8 %v136
    %v138 = vperm.slane %v134, %v137
    %v140 = vmul.f32 %v43, %v138
    %v141 = vmul.f32 %v44, %v138
    %v142 = vadd.f32 %v127, %v140
    %v143 = vadd.f32 %v128, %v141
    %s144 = scalar_lea.vmem %s1, 48
    %v145 = vld [vmem:[%s144] sm:$0xf]
    %147 = vset.pattern.permute.xlu0 0
    %148 = vperm.xlu0 %147, %v145
    %v149 = vpop.permute.xlu0 %148
    %v151 = vunpack.c.l.s4 839922192
    %v152 = vunpack.c.0.s8 %v151
    %v153 = vperm.slane %v149, %v152
    %v155 = vmul.f32 %v47, %v153
    %v156 = vmul.f32 %v48, %v153
    %v157 = vadd.f32 %v142, %v155
    %v158 = vadd.f32 %v143, %v156
    %s159 = scalar_lea.vmem %s1, 56
    %v160 = vld [vmem:[%s159] sm:$0xf]
    %162 = vset.pattern.permute.xlu0 0
    %163 = vperm.xlu0 %162, %v160
    %v164 = vpop.permute.xlu0 %163
    %v166 = vunpack.c.l.s4 839922192
    %v167 = vunpack.c.0.s8 %v166
    %v168 = vperm.slane %v164, %v167
    %v170 = vmul.f32 %v51, %v168
    %v171 = vmul.f32 %v52, %v168
    %v172 = vadd.f32 %v157, %v170
    %v173 = vadd.f32 %v158, %v171
    %s174 = scalar_lea.vmem %s1, 64
    %v175 = vld [vmem:[%s174] sm:$0xf]
    %177 = vset.pattern.permute.xlu0 0
    %178 = vperm.xlu0 %177, %v175
    %v179 = vpop.permute.xlu0 %178
    %v181 = vunpack.c.l.s4 839922192
    %v182 = vunpack.c.0.s8 %v181
    %v183 = vperm.slane %v179, %v182
    %v185 = vmul.f32 %v55, %v183
    %v186 = vmul.f32 %v56, %v183
    %v187 = vadd.f32 %v172, %v185
    %v188 = vadd.f32 %v173, %v186
    %v189 = vld [vmem:[%s2] sm:$0xf]
    %191 = vset.pattern.permute.xlu0 0
    %192 = vperm.xlu0 %191, %v189
    %v193 = vpop.permute.xlu0 %192
    %v195 = vunpack.c.l.s4 839922192
    %v196 = vunpack.c.0.s8 %v195
    %v197 = vperm.slane %v193, %v196
    %v199 = vadd.f32 %v187, %v197
    %v200 = vadd.f32 %v188, %v197
    %v201 = vmax.f32 %v199, 0.0
    %v202 = vmax.f32 %v200, 0.0
    %v203 = vmin.f32 %v201, 6.0
    %v204 = vmin.f32 %v202, 6.0
    %s205 = scalar_lea.vmem %s1, 4
    %v206 = vld [vmem:[%s205] sm:$0xf]
    %208 = vset.pattern.permute.xlu0 0
    %209 = vperm.xlu0 %208, %v206
    %v210 = vpop.permute.xlu0 %209
    %v212 = vunpack.c.l.s4 839922192
    %v213 = vunpack.c.0.s8 %v212
    %v214 = vperm.slane %v210, %v213
    %v216 = vmul.f32 %v23, %v214
    %v217 = vmul.f32 %v24, %v214
    %s218 = scalar_lea.vmem %s1, 12
    %v219 = vld [vmem:[%s218] sm:$0xf]
    %221 = vset.pattern.permute.xlu0 0
    %222 = vperm.xlu0 %221, %v219
    %v223 = vpop.permute.xlu0 %222
    %v225 = vunpack.c.l.s4 839922192
    %v226 = vunpack.c.0.s8 %v225
    %v227 = vperm.slane %v223, %v226
    %v229 = vmul.f32 %v27, %v227
    %v230 = vmul.f32 %v28, %v227
    %v231 = vadd.f32 %v216, %v229
    %v232 = vadd.f32 %v217, %v230
    %s233 = scalar_lea.vmem %s1, 20
    %v234 = vld [vmem:[%s233] sm:$0xf]
    %236 = vset.pattern.permute.xlu0 0
    %237 = vperm.xlu0 %236, %v234
    %v238 = vpop.permute.xlu0 %237
    %v240 = vunpack.c.l.s4 839922192
    %v241 = vunpack.c.0.s8 %v240
    %v242 = vperm.slane %v238, %v241
    %v244 = vmul.f32 %v31, %v242
    %v245 = vmul.f32 %v32, %v242
    %v246 = vadd.f32 %v231, %v244
    %v247 = vadd.f32 %v232, %v245
    %s248 = scalar_lea.vmem %s1, 28
    %v249 = vld [vmem:[%s248] sm:$0xf]
    %251 = vset.pattern.permute.xlu0 0
    %252 = vperm.xlu0 %251, %v249
    %v253 = vpop.permute.xlu0 %252
    %v255 = vunpack.c.l.s4 839922192
    %v256 = vunpack.c.0.s8 %v255
    %v257 = vperm.slane %v253, %v256
    %v259 = vmul.f32 %v35, %v257
    %v260 = vmul.f32 %v36, %v257
    %v261 = vadd.f32 %v246, %v259
    %v262 = vadd.f32 %v247, %v260
    %s263 = scalar_lea.vmem %s1, 36
    %v264 = vld [vmem:[%s263] sm:$0xf]
    %266 = vset.pattern.permute.xlu0 0
    %267 = vperm.xlu0 %266, %v264
    %v268 = vpop.permute.xlu0 %267
    %v270 = vunpack.c.l.s4 839922192
    %v271 = vunpack.c.0.s8 %v270
    %v272 = vperm.slane %v268, %v271
    %v274 = vmul.f32 %v39, %v272
    %v275 = vmul.f32 %v40, %v272
    %v276 = vadd.f32 %v261, %v274
    %v277 = vadd.f32 %v262, %v275
    %s278 = scalar_lea.vmem %s1, 44
    %v279 = vld [vmem:[%s278] sm:$0xf]
    %281 = vset.pattern.permute.xlu0 0
    %282 = vperm.xlu0 %281, %v279
    %v283 = vpop.permute.xlu0 %282
    %v285 = vunpack.c.l.s4 839922192
    %v286 = vunpack.c.0.s8 %v285
    %v287 = vperm.slane %v283, %v286
    %v289 = vmul.f32 %v43, %v287
    %v290 = vmul.f32 %v44, %v287
    %v291 = vadd.f32 %v276, %v289
    %v292 = vadd.f32 %v277, %v290
    %s293 = scalar_lea.vmem %s1, 52
    %v294 = vld [vmem:[%s293] sm:$0xf]
    %296 = vset.pattern.permute.xlu0 0
    %297 = vperm.xlu0 %296, %v294
    %v298 = vpop.permute.xlu0 %297
    %v300 = vunpack.c.l.s4 839922192
    %v301 = vunpack.c.0.s8 %v300
    %v302 = vperm.slane %v298, %v301
    %v304 = vmul.f32 %v47, %v302
    %v305 = vmul.f32 %v48, %v302
    %v306 = vadd.f32 %v291, %v304
    %v307 = vadd.f32 %v292, %v305
    %s308 = scalar_lea.vmem %s1, 60
    %v309 = vld [vmem:[%s308] sm:$0xf]
    %311 = vset.pattern.permute.xlu0 0
    %312 = vperm.xlu0 %311, %v309
    %v313 = vpop.permute.xlu0 %312
    %v315 = vunpack.c.l.s4 839922192
    %v316 = vunpack.c.0.s8 %v315
    %v317 = vperm.slane %v313, %v316
    %v319 = vmul.f32 %v51, %v317
    %v320 = vmul.f32 %v52, %v317
    %v321 = vadd.f32 %v306, %v319
    %v322 = vadd.f32 %v307, %v320
    %s323 = scalar_lea.vmem %s1, 68
    %v324 = vld [vmem:[%s323] sm:$0xf]
    %326 = vset.pattern.permute.xlu0 0
    %327 = vperm.xlu0 %326, %v324
    %v328 = vpop.permute.xlu0 %327
    %v330 = vunpack.c.l.s4 839922192
    %v331 = vunpack.c.0.s8 %v330
    %v332 = vperm.slane %v328, %v331
    %v334 = vmul.f32 %v55, %v332
    %v335 = vmul.f32 %v56, %v332
    %v336 = vadd.f32 %v321, %v334
    %v337 = vadd.f32 %v322, %v335
    %s338 = scalar_lea.vmem %s2, 4
    %v339 = vld [vmem:[%s338] sm:$0xf]
    %341 = vset.pattern.permute.xlu0 0
    %342 = vperm.xlu0 %341, %v339
    %v343 = vpop.permute.xlu0 %342
    %v345 = vunpack.c.l.s4 839922192
    %v346 = vunpack.c.0.s8 %v345
    %v347 = vperm.slane %v343, %v346
    %v349 = vadd.f32 %v336, %v347
    %v350 = vadd.f32 %v337, %v347
    %v351 = vmax.f32 %v349, 0.0
    %v352 = vmax.f32 %v350, 0.0
    %v353 = vmin.f32 %v351, 6.0
    %v354 = vmin.f32 %v352, 6.0
    %357 = vst [vmem:[#allocation1] ss:$2 sm:$0xff] %v203
    %s358 = scalar_lea.vmem [#allocation1], 16
    %359 = vst [vmem:[%s358] ss:$2 sm:$0xff] %v204
    %v360 = vld.sshfl [vmem:[#allocation1] sm:$0xff pattern:$0x75316420]
    %v361 = vld.sshfl [vmem:[#allocation1 + $0x8] sm:$0xff pattern:$0x75316420]
    %v362 = vld.sshfl [vmem:[#allocation1 + $0x10] sm:$0xff pattern:$0x75316420]
    %v363 = vld.sshfl [vmem:[#allocation1 + $0x18] sm:$0xff pattern:$0x75316420]
    %s370 = scalar_lea.vmem [#allocation1], 1
    %371 = vst [vmem:[%s370] ss:$2 sm:$0xff] %v353
    %s372 = scalar_lea.vmem [#allocation1], 17
    %373 = vst [vmem:[%s372] ss:$2 sm:$0xff] %v354
    %v374 = vld.sshfl [vmem:[#allocation1] sm:$0xff pattern:$0x75316420]
    %v375 = vld.sshfl [vmem:[#allocation1 + $0x8] sm:$0xff pattern:$0x75316420]
    %v376 = vld.sshfl [vmem:[#allocation1 + $0x10] sm:$0xff pattern:$0x75316420]
    %v377 = vld.sshfl [vmem:[#allocation1 + $0x18] sm:$0xff pattern:$0x75316420]
    %384 = vst [vmem:[#allocation1] ss:$2 sm:$0xff] %v39
    %s385 = scalar_lea.vmem [#allocation1], 16
    %386 = vst [vmem:[%s385] ss:$2 sm:$0xff] %v40
    %v387 = vld.sshfl [vmem:[#allocation1] sm:$0xff pattern:$0x75316420]
    %v388 = vld.sshfl [vmem:[#allocation1 + $0x8] sm:$0xff pattern:$0x75316420]
    %v389 = vld.sshfl [vmem:[#allocation1 + $0x10] sm:$0xff pattern:$0x75316420]
    %v390 = vld.sshfl [vmem:[#allocation1 + $0x18] sm:$0xff pattern:$0x75316420]
    %vm395 = vcmask 1043456
    %v396 = vsel %vm395, %v360, %v374
    %v397 = vsel %vm395, %v361, %v375
    %v398 = vsel %vm395, %v362, %v376
    %v399 = vsel %vm395, %v363, %v377
    %v400 = vpack.c.bf16 %v387, %v396
    %v401 = vpack.c.bf16 %v388, %v397
    %v402 = vpack.c.bf16 %v389, %v398
    %v403 = vpack.c.bf16 %v390, %v399
    %v404 = vld [vmem:[%s3] sm:$0xf]
    %v405 = vld [vmem:[%s4] sm:$0xff]
    %407 = vset.pattern.permute.xlu0 0
    %408 = vperm.xlu0 %407, %v405
    %v409 = vpop.permute.xlu0 %408
    %vm411 = vcmask 97280
    %v413 = vsel %vm411, %v404, 0
    %vm415 = vcmask 1045504
    %v417 = vsel %vm415, %v400, 0
    %v420 = vsel %vm415, %v401, 0
    %v423 = vsel %vm415, %v402, 0
    %v426 = vsel %vm415, %v403, 0
    %428 = vmatpush.bf16.msra.mxu0 0
    %429 = vmatpush.bf16.msra.mxu0 0
    %430 = vmatpush.bf16.msra.mxu0 0
    %431 = vmatpush.bf16.msra.mxu0 0
    %432 = vmatpush.bf16.msra.mxu0 0
    %433 = vmatpush.bf16.msra.mxu0 0
    %434 = vmatpush.bf16.msra.mxu0 0
    %435 = vmatpush.bf16.msra.mxu0 %v417
    %436 = vmatmul.bf16.gmra.mxu0 %v413
    %v437 = vpop.f32.mrf.mxu0
    %v438 = vadd.f32 %v409, %v437
    %v439 = vpop.f32.mrf.mxu0
    %440 = vdwg.mxu0
    %441 = vmatpush.bf16.msra.mxu0 0
    %442 = vmatpush.bf16.msra.mxu0 0
    %443 = vmatpush.bf16.msra.mxu0 0
    %444 = vmatpush.bf16.msra.mxu0 0
    %445 = vmatpush.bf16.msra.mxu0 0
    %446 = vmatpush.bf16.msra.mxu0 0
    %447 = vmatpush.bf16.msra.mxu0 0
    %448 = vmatpush.bf16.msra.mxu0 %v420
    %449 = vmatmul.bf16.gmra.mxu0 %v413
    %v450 = vpop.f32.mrf.mxu0
    %v451 = vadd.f32 %v409, %v450
    %v452 = vpop.f32.mrf.mxu0
    %453 = vdwg.mxu0
    %454 = vmatpush.bf16.msra.mxu0 0
    %455 = vmatpush.bf16.msra.mxu0 0
    %456 = vmatpush.bf16.msra.mxu0 0
    %457 = vmatpush.bf16.msra.mxu0 0
    %458 = vmatpush.bf16.msra.mxu0 0
    %459 = vmatpush.bf16.msra.mxu0 0
    %460 = vmatpush.bf16.msra.mxu0 0
    %461 = vmatpush.bf16.msra.mxu0 %v423
    %462 = vmatmul.bf16.gmra.mxu0 %v413
    %v463 = vpop.f32.mrf.mxu0
    %v464 = vadd.f32 %v409, %v463
    %v465 = vpop.f32.mrf.mxu0
    %466 = vdwg.mxu0
    %467 = vmatpush.bf16.msra.mxu0 0
    %468 = vmatpush.bf16.msra.mxu0 0
    %469 = vmatpush.bf16.msra.mxu0 0
    %470 = vmatpush.bf16.msra.mxu0 0
    %471 = vmatpush.bf16.msra.mxu0 0
    %472 = vmatpush.bf16.msra.mxu0 0
    %473 = vmatpush.bf16.msra.mxu0 0
    %474 = vmatpush.bf16.msra.mxu0 %v426
    %475 = vmatmul.bf16.gmra.mxu0 %v413
    %v476 = vpop.f32.mrf.mxu0
    %v477 = vadd.f32 %v409, %v476
    %v478 = vpop.f32.mrf.mxu0
    %479 = vdwg.mxu0
    %480 = vst [vmem:[#allocation2] sm:$0xff] %v438
    %481 = vst [vmem:[#allocation2 + $0x8] sm:$0xff] %v451
    %482 = vst [vmem:[#allocation2 + $0x10] sm:$0xff] %v464
    %483 = vst [vmem:[#allocation2 + $0x18] sm:$0xff] %v477
    // Predicated region
    $region22: #{tpu_custom_call.1} parent=1 // pred_check
      _
    $region23: #{tpu_custom_call.1} parent=1 // pred_check_branch
      %485 = sbr.rel (0) target = $region25
    $region24: #{tpu_custom_call.1} parent=1 // pred_region
      %487 = vsyncadd [#allocation3], 0
      %s489 = sshll.u32 [#allocation2], 4
      %s490 = int_to_ptr.vmem [resolvable:$true] %s489
      %s491 = sshll.u32 %s5, 4
      %s492 = int_to_ptr.hbm [resolvable:$true] %s491
      %494 = dma.vmem_to_hbm [thread:$0]  %s490, 512, %s492, [#allocation3]
    $region25: #{tpu_custom_call.1} parent=1 // pred_fallthru
      _
    // Predicated region
    $region26: #{tpu_custom_call.1} parent=1 // pred_check
      _
    $region27: #{tpu_custom_call.1} parent=1 // pred_check_branch
      %496 = sbr.rel (0) target = $region29
    $region28: #{tpu_custom_call.1} parent=1 // pred_region
      %498 = dma.done [#allocation3], 512
    $region29: #{tpu_custom_call.1} parent=1 // pred_fallthru
      _
    %499 = vsyncpa [#allocation3], 1

</llo_original>
